<compile_context>
chip_gen: v7x
topology: tpu7x:2x2x1
jax: 0.10.0
libtpu: 0.0.40
codegen_flags: <defaults>
</compile_context>

<pallas_src>
import jax
import jax.numpy as jnp
from jax.experimental import pallas as pl
from jax.experimental.pallas import tpu as pltpu


def _round_up(n, m):
    return ((n + m - 1) // m) * m


def _encoder_kernel(x_ref, w1_ref, b1_ref, w2_ref, b2_ref, o_ref):
    # hidden = relu(x @ W1 + b1)  -- f32 operands, f32 accumulate on MXU.
    h = jnp.dot(x_ref[...], w1_ref[...], preferred_element_type=jnp.float32)
    h = jnp.maximum(h + b1_ref[...], 0.0)            # b1 is (1, H1p), broadcasts over batch
    # out = tanh(h @ W2 + b2)
    y = jnp.dot(h, w2_ref[...], preferred_element_type=jnp.float32)
    o_ref[...] = jnp.tanh(y + b2_ref[...]).astype(o_ref.dtype)


def _choose_batch_tile(B, tile_b):
    """Pick a batch tile: multiple of 8, amortizes per-step overhead, and (when B
    is large enough) gives >= 2 grid steps so v7x's two TensorCores both get work."""
    if B <= 8:
        return B                       # block equals full batch dim -> valid, 1 tile
    half = _round_up(pl.cdiv(B, 2), 8)  # at least 2 tiles when it matters
    tb = min(tile_b, half)
    return max(8, _round_up(tb, 8))


def pca_landmark_encoder(x, w1, b1, w2, b2, *, tile_b=4096):
    """x: (B, input_dims) f32 -> (B, 2*start_hidden_dims) f32.

    w1: (input_dims, H1), b1: (H1,), w2: (H1, H2), b2: (H2,) with H2 = 2*H1.
    """
    B, d_in = x.shape
    h1 = w1.shape[1]
    h2 = w2.shape[1]

    # ---- Pad the *hidden* dim to 128 lanes (free: zero cols/rows contribute 0). ----
    h1p = _round_up(h1, 128)
    if h1p != h1:
        w1 = jnp.pad(w1, ((0, 0), (0, h1p - h1)))
        b1 = jnp.pad(b1, (0, h1p - h1))
        w2 = jnp.pad(w2, ((0, h1p - h1), (0, 0)))

    # ---- Keep everything f32 (matches the torch module); weights are resident. ----
    x = x.astype(jnp.float32)
    w1 = w1.astype(jnp.float32)
    w2 = w2.astype(jnp.float32)
    b1 = b1.reshape(1, h1p).astype(jnp.float32)
    b2 = b2.reshape(1, h2).astype(jnp.float32)

    # ---- Batch tiling: no wrapper padding; Pallas handles the ragged last tile. ----
    tb = _choose_batch_tile(B, tile_b)
    num_tiles = pl.cdiv(B, tb)

    itemsize = 4
    cost = pl.CostEstimate(
        flops=2 * B * (d_in * h1p + h1p * h2),
        transcendentals=B * h2,
        bytes_accessed=(B * d_in * itemsize          # x read
                        + (d_in * h1p + h1p * h2 + h1p + h2) * itemsize  # weights/biases
                        + B * h2 * itemsize),        # output write
    )

    out = pl.pallas_call(
        _encoder_kernel,
        out_shape=jax.ShapeDtypeStruct((B, h2), jnp.float32),
        grid=(num_tiles,),
        in_specs=[
            pl.BlockSpec((tb, d_in), lambda i: (i, 0)),    # x: streamed per batch tile
            pl.BlockSpec((d_in, h1p), lambda i: (0, 0)),   # W1: resident across grid
            pl.BlockSpec((1, h1p), lambda i: (0, 0)),      # b1: resident
            pl.BlockSpec((h1p, h2), lambda i: (0, 0)),     # W2: resident
            pl.BlockSpec((1, h2), lambda i: (0, 0)),       # b2: resident
        ],
        out_specs=pl.BlockSpec((tb, h2), lambda i: (i, 0)),
        compiler_params=pltpu.CompilerParams(
            dimension_semantics=("parallel",),             # shard batch tiles across TCs
        ),
        cost_estimate=cost,
    )(x, w1, b1, w2, b2)

    return out


def init_params(key, input_dims, start_hidden_dims):
    """Deterministic init mimicking PyTorch's default Linear init (U[-1/sqrt(fan_in), ...])."""
    h1 = start_hidden_dims
    h2 = 2 * start_hidden_dims
    k1, k2, k3, k4 = jax.random.split(key, 4)
    lim1 = 1.0 / jnp.sqrt(float(input_dims))
    lim2 = 1.0 / jnp.sqrt(float(h1))
    w1 = jax.random.uniform(k1, (input_dims, h1), jnp.float32, -lim1, lim1)
    b1 = jax.random.uniform(k2, (h1,), jnp.float32, -lim1, lim1)
    w2 = jax.random.uniform(k3, (h1, h2), jnp.float32, -lim2, lim2)
    b2 = jax.random.uniform(k4, (h2,), jnp.float32, -lim2, lim2)
    return w1, b1, w2, b2


def reference(x, w1, b1, w2, b2):
    """Pure f32 reference (full precision matmuls)."""
    hp = jax.lax.Precision.HIGHEST
    h = jnp.maximum(jnp.dot(x, w1, precision=hp) + b1, 0.0)
    return jnp.tanh(jnp.dot(h, w2, precision=hp) + b2)


if __name__ == "__main__":
    # Small shapes consistent with the module: batch=2, input_dims=6, hidden=32 -> out 64.
    batch = 2
    input_dims = 6
    start_hidden_dims = 32

    key = jax.random.PRNGKey(0)
    kx, kp = jax.random.split(key)
    x = jax.random.normal(kx, (batch, input_dims), dtype=jnp.float32)
    w1, b1, w2, b2 = init_params(kp, input_dims, start_hidden_dims)

    out = jax.block_until_ready(pca_landmark_encoder(x, w1, b1, w2, b2))
    ref = reference(x, w1, b1, w2, b2)
    assert out.shape == (batch, 2 * start_hidden_dims), out.shape
    assert jnp.allclose(out, ref, atol=1e-3, rtol=1e-3), "mismatch vs f32 reference"

    # Also exercise a larger, ragged batch so the cdiv grid / masked last tile path runs.
    bx = jax.random.normal(kx, (1000, input_dims), dtype=jnp.float32)
    out_big = jax.block_until_ready(
        pca_landmark_encoder(bx, w1, b1, w2, b2, tile_b=256))
    ref_big = reference(bx, w1, b1, w2, b2)
    assert out_big.shape == (1000, 2 * start_hidden_dims), out_big.shape
    assert jnp.allclose(out_big, ref_big, atol=1e-3, rtol=1e-3), "ragged-batch mismatch"

    print("KERNEL_OK")
</pallas_src>

<mosaic_0001>
module attributes {stable_mosaic.version = 11 : i64} {
  func.func @_encoder_kernel(%arg0: i32, %arg1: memref<2x6xf32, #tpu.memory_space<vmem>>, %arg2: memref<6x128xf32, #tpu.memory_space<vmem>>, %arg3: memref<1x128xf32, #tpu.memory_space<vmem>>, %arg4: memref<128x64xf32, #tpu.memory_space<vmem>>, %arg5: memref<1x64xf32, #tpu.memory_space<vmem>>, %arg6: memref<2x64xf32, #tpu.memory_space<vmem>>) attributes {dimension_semantics = [#tpu.dimension_semantics<parallel>], iteration_bounds = array<i64: 1>, scalar_prefetch = 0 : i64, scratch_operands = 0 : i64, tpu.core_type = #tpu.core_type<tc>, window_params = [{transform_indices = @transform_0, window_bounds = array<i64: 2, 6>}, {pipeline_mode = #tpu.pipeline_mode<synchronous>, transform_indices = @transform_1, window_bounds = array<i64: 6, 128>}, {pipeline_mode = #tpu.pipeline_mode<synchronous>, transform_indices = @transform_2, window_bounds = array<i64: 1, 128>}, {pipeline_mode = #tpu.pipeline_mode<synchronous>, transform_indices = @transform_3, window_bounds = array<i64: 128, 64>}, {pipeline_mode = #tpu.pipeline_mode<synchronous>, transform_indices = @transform_4, window_bounds = array<i64: 1, 64>}, {transform_indices = @transform_5, window_bounds = array<i64: 2, 64>}]} {
    %c0 = arith.constant 0 : index
    %c0_0 = arith.constant 0 : index
    %0 = vector.load %arg1[%c0, %c0_0] : memref<2x6xf32, #tpu.memory_space<vmem>>, vector<2x6xf32>
    %c0_1 = arith.constant 0 : index
    %c0_2 = arith.constant 0 : index
    %1 = vector.load %arg2[%c0_1, %c0_2] : memref<6x128xf32, #tpu.memory_space<vmem>>, vector<6x128xf32>
    %cst = arith.constant dense<0.000000e+00> : vector<2x128xf32>
    %2 = tpu.matmul %0, %1, %cst {dimension_numbers = #tpu.dot_dimension_numbers<[1], [0], [0], [1], [0, 0, 1, 1], [], []>} : vector<2x6xf32>, vector<6x128xf32>, vector<2x128xf32> -> vector<2x128xf32>
    %c0_3 = arith.constant 0 : index
    %c0_4 = arith.constant 0 : index
    %3 = vector.load %arg3[%c0_3, %c0_4] : memref<1x128xf32, #tpu.memory_space<vmem>>, vector<1x128xf32>
    %4 = vector.broadcast %3 : vector<1x128xf32> to vector<2x128xf32>
    %5 = arith.addf %2, %4 : vector<2x128xf32>
    %cst_5 = arith.constant 0.000000e+00 : f32
    %6 = vector.broadcast %cst_5 : f32 to vector<2x128xf32>
    %7 = arith.maximumf %5, %6 : vector<2x128xf32>
    %c0_6 = arith.constant 0 : index
    %c0_7 = arith.constant 0 : index
    %8 = vector.load %arg4[%c0_6, %c0_7] : memref<128x64xf32, #tpu.memory_space<vmem>>, vector<128x64xf32>
    %cst_8 = arith.constant dense<0.000000e+00> : vector<2x64xf32>
    %9 = tpu.matmul %7, %8, %cst_8 {dimension_numbers = #tpu.dot_dimension_numbers<[1], [0], [0], [1], [0, 0, 1, 1], [], []>} : vector<2x128xf32>, vector<128x64xf32>, vector<2x64xf32> -> vector<2x64xf32>
    %c0_9 = arith.constant 0 : index
    %c0_10 = arith.constant 0 : index
    %10 = vector.load %arg5[%c0_9, %c0_10] : memref<1x64xf32, #tpu.memory_space<vmem>>, vector<1x64xf32>
    %11 = vector.broadcast %10 : vector<1x64xf32> to vector<2x64xf32>
    %12 = arith.addf %9, %11 : vector<2x64xf32>
    %13 = math.tanh %12 : vector<2x64xf32>
    %c0_11 = arith.constant 0 : index
    %c0_12 = arith.constant 0 : index
    %14 = vector.load %arg6[%c0_11, %c0_12] : memref<2x64xf32, #tpu.memory_space<vmem>>, vector<2x64xf32>
    tpu.vector_store %arg6[%c0_11, %c0_12], %13 {strides = array<i32>} : memref<2x64xf32, #tpu.memory_space<vmem>>, vector<2x64xf32>,
    return
  }
  func.func @transform_0(%arg0: i32) -> (i32, i32) {
    %c0_i32 = arith.constant 0 : i32
    %c0_i32_0 = arith.constant 0 : i32
    return %arg0, %c0_i32 : i32, i32
  }
  func.func @transform_1(%arg0: i32) -> (i32, i32) {
    %c0_i32 = arith.constant 0 : i32
    %c0_i32_0 = arith.constant 0 : i32
    %c0_i32_1 = arith.constant 0 : i32
    return %c0_i32, %c0_i32_0 : i32, i32
  }
  func.func @transform_2(%arg0: i32) -> (i32, i32) {
    %c0_i32 = arith.constant 0 : i32
    %c0_i32_0 = arith.constant 0 : i32
    %c0_i32_1 = arith.constant 0 : i32
    return %c0_i32, %c0_i32_0 : i32, i32
  }
  func.func @transform_3(%arg0: i32) -> (i32, i32) {
    %c0_i32 = arith.constant 0 : i32
    %c0_i32_0 = arith.constant 0 : i32
    %c0_i32_1 = arith.constant 0 : i32
    return %c0_i32, %c0_i32_0 : i32, i32
  }
  func.func @transform_4(%arg0: i32) -> (i32, i32) {
    %c0_i32 = arith.constant 0 : i32
    %c0_i32_0 = arith.constant 0 : i32
    %c0_i32_1 = arith.constant 0 : i32
    return %c0_i32, %c0_i32_0 : i32, i32
  }
  func.func @transform_5(%arg0: i32) -> (i32, i32) {
    %c0_i32 = arith.constant 0 : i32
    %c0_i32_0 = arith.constant 0 : i32
    return %arg0, %c0_i32 : i32, i32
  }
}

</mosaic_0001>

<llo_original>
// kernel: tpu_custom_call.1
$region0: #{tpu_custom_call.1}
  #allocation0 [shape = 'u32[]', space=smem, size = 0x4, offset = 0x4, fixed_abs, tag = 'smem constant byte address 0x4 - core index']
  #allocation1 [shape = 'u32[144,128]{1,0:T(1,128)}', space=vmem, size = 0x12000, scoped, tag = 'internal scratch']
  %s0 = inlined_call_operand.vmem [shape: f32[2,6], index: 0, kind: input, shape index: {}]
  %s1 = inlined_call_operand.vmem [shape: f32[6,128], index: 1, kind: input, shape index: {}]
  %s2 = inlined_call_operand.vmem [shape: f32[1,128], index: 2, kind: input, shape index: {}]
  %s3 = inlined_call_operand.vmem [shape: f32[128,64], index: 3, kind: input, shape index: {}]
  %s4 = inlined_call_operand.vmem [shape: f32[1,64], index: 4, kind: input, shape index: {}]
  %s5 = inlined_call_operand.hbm [shape: f32[2,64], index: 5, kind: output, shape index: {}]
  %s6 = sld [smem:[#allocation0]]
  $region30: #{tpu_custom_call.1} parent=0
    _
  %s8 = ssub.s32 1, %s6
  %s9 = scalar_select 0, %s8, %s6
  $region1: #{tpu_custom_call.1} parent=0
    #allocation2 [shape = 'u8[1024]{0}', space=vmem, size = 0x400, scoped, tag = 'output window, operand 0, single buffered']
    #allocation3 [shape = 's32[1]{0}', space=sflag, size = 0x4, scoped, tag = 'scoped memory for tpu_custom_call.1']
    %10 = vsyncpa [#allocation3], 0
    // Predicated region
    $region2: #{tpu_custom_call.1} parent=1 // pred_check
      _
    $region3: #{tpu_custom_call.1} parent=1 // pred_check_branch
      %12 = sbr.rel (0) target = $region5
    $region4: #{tpu_custom_call.1} parent=1 // pred_region
      _
    $region5: #{tpu_custom_call.1} parent=1 // pred_fallthru
      _
    // Predicated region
    $region6: #{tpu_custom_call.1} parent=1 // pred_check
      _
    $region7: #{tpu_custom_call.1} parent=1 // pred_check_branch
      %14 = sbr.rel (0) target = $region9
    $region8: #{tpu_custom_call.1} parent=1 // pred_region
      _
    $region9: #{tpu_custom_call.1} parent=1 // pred_fallthru
      _
    // Predicated region
    $region10: #{tpu_custom_call.1} parent=1 // pred_check
      _
    $region11: #{tpu_custom_call.1} parent=1 // pred_check_branch
      %16 = sbr.rel (0) target = $region13
    $region12: #{tpu_custom_call.1} parent=1 // pred_region
      _
    $region13: #{tpu_custom_call.1} parent=1 // pred_fallthru
      _
    // Predicated region
    $region14: #{tpu_custom_call.1} parent=1 // pred_check
      _
    $region15: #{tpu_custom_call.1} parent=1 // pred_check_branch
      %18 = sbr.rel (0) target = $region17
    $region16: #{tpu_custom_call.1} parent=1 // pred_region
      _
    $region17: #{tpu_custom_call.1} parent=1 // pred_fallthru
      _
    // Predicated region
    $region18: #{tpu_custom_call.1} parent=1 // pred_check
      _
    $region19: #{tpu_custom_call.1} parent=1 // pred_check_branch
      %20 = sbr.rel (0) target = $region21
    $region20: #{tpu_custom_call.1} parent=1 // pred_region
      _
    $region21: #{tpu_custom_call.1} parent=1 // pred_fallthru
      _
    %v21 = vld [vmem:[%s0] sm:$0x3]
    %v22 = vld [vmem:[%s1] sm:$0x3f]
    %v23 = vld [vmem:[%s2] sm:$0x1]
    %v25 = vlaneseq
    %v26 = vshrl.u32 %v25, 7
    %v27 = vsub.s32 0, %v26
    %v28 = vrot.slane %v23, %v27
    %vm30 = vcmask 48128
    %v32 = vsel %vm30, %v21, 0
    %vm34 = vcmask 1045504
    %v36 = vsel %vm34, %v22, 0
    %38 = vmatprep.subr.mxu0 0.0
    %39 = vmatpush1.msra.mxu0 %v36
    %40 = vmatprep.subr.mxu0 0.0
    %41 = vmatpush1.msra.mxu0 0.0
    %42 = vmatprep.subr.mxu0 0.0
    %43 = vmatpush1.msra.mxu0 0.0
    %44 = vmatprep.subr.mxu0 0.0
    %45 = vmatpush1.msra.mxu0 0.0
    %46 = vmatprep.subr.mxu0 0.0
    %47 = vmatpush1.msra.mxu0 0.0
    %48 = vmatprep.subr.mxu0 0.0
    %49 = vmatpush1.msra.mxu0 0.0
    %50 = vmatprep.subr.mxu0 0.0
    %51 = vmatpush1.msra.mxu0 0.0
    %52 = vmatprep.subr.mxu0 0.0
    %53 = vmatpush1.msra.mxu0 0.0
    %54 = vmatprep.subr.mxu0 0.0
    %55 = vmatpush1.msra.mxu0 0.0
    %56 = vmatprep.subr.mxu0 0.0
    %57 = vmatpush1.msra.mxu0 0.0
    %58 = vmatprep.subr.mxu0 0.0
    %59 = vmatpush1.msra.mxu0 0.0
    %60 = vmatprep.subr.mxu0 0.0
    %61 = vmatpush1.msra.mxu0 0.0
    %62 = vmatprep.subr.mxu0 0.0
    %63 = vmatpush1.msra.mxu0 0.0
    %64 = vmatprep.subr.mxu0 0.0
    %65 = vmatpush1.msra.mxu0 0.0
    %66 = vmatprep.subr.mxu0 0.0
    %67 = vmatpush1.msra.mxu0 0.0
    %68 = vmatprep.subr.mxu0 0.0
    %69 = vmatpush1.msra.mxu0 0.0
    %70 = vmatprep.subr.mxu0 0.0
    %71 = vmatpush1.msra.mxu0 0.0
    %72 = vmatprep.subr.mxu0 0.0
    %73 = vmatpush1.msra.mxu0 0.0
    %74 = vmatprep.subr.mxu0 0.0
    %75 = vmatpush1.msra.mxu0 0.0
    %76 = vmatprep.subr.mxu0 0.0
    %77 = vmatpush1.msra.mxu0 0.0
    %78 = vmatprep.subr.mxu0 0.0
    %79 = vmatpush1.msra.mxu0 0.0
    %80 = vmatprep.subr.mxu0 0.0
    %81 = vmatpush1.msra.mxu0 0.0
    %82 = vmatprep.subr.mxu0 0.0
    %83 = vmatpush1.msra.mxu0 0.0
    %84 = vmatprep.subr.mxu0 0.0
    %85 = vmatpush1.msra.mxu0 0.0
    %86 = vmatprep.subr.mxu0 0.0
    %87 = vmatpush1.msra.mxu0 0.0
    %88 = vmatprep.subr.mxu0 0.0
    %89 = vmatpush1.msra.mxu0 0.0
    %90 = vmatprep.subr.mxu0 0.0
    %91 = vmatpush1.msra.mxu0 0.0
    %92 = vmatprep.subr.mxu0 0.0
    %93 = vmatpush1.msra.mxu0 0.0
    %94 = vmatprep.subr.mxu0 0.0
    %95 = vmatpush1.msra.mxu0 0.0
    %96 = vmatprep.subr.mxu0 0.0
    %97 = vmatpush1.msra.mxu0 0.0
    %98 = vmatprep.subr.mxu0 0.0
    %99 = vmatpush1.msra.mxu0 0.0
    %100 = vmatprep.subr.mxu0 0.0
    %101 = vmatpush1.msra.mxu0 0.0
    %102 = vmatprep.mubr.f32.mxu0 0.0
    %103 = vmatmul.mubr.f32.gmra.mrb[0].mxu0 %v32
    %v104 = vpop.f32.mrb[0].mxu0
    %v105 = vadd.f32 %v28, %v104
    %v106 = vpop.f32.mrb[0].mxu0
    %107 = vdwg.mxu0
    %v108 = vmax.f32 %v105, 0.0
    %v109 = vld [vmem:[%s3] sm:$0xff]
    %v110 = vld [vmem:[%s3 + $0x8] sm:$0xff]
    %v111 = vld [vmem:[%s3 + $0x10] sm:$0xff]
    %v112 = vld [vmem:[%s3 + $0x18] sm:$0xff]
    %v113 = vld [vmem:[%s3 + $0x20] sm:$0xff]
    %v114 = vld [vmem:[%s3 + $0x28] sm:$0xff]
    %v115 = vld [vmem:[%s3 + $0x30] sm:$0xff]
    %v116 = vld [vmem:[%s3 + $0x38] sm:$0xff]
    %v117 = vld [vmem:[%s3 + $0x40] sm:$0xff]
    %v118 = vld [vmem:[%s3 + $0x48] sm:$0xff]
    %v119 = vld [vmem:[%s3 + $0x50] sm:$0xff]
    %v120 = vld [vmem:[%s3 + $0x58] sm:$0xff]
    %v121 = vld [vmem:[%s3 + $0x60] sm:$0xff]
    %v122 = vld [vmem:[%s3 + $0x68] sm:$0xff]
    %v123 = vld [vmem:[%s3 + $0x70] sm:$0xff]
    %v124 = vld [vmem:[%s3 + $0x78] sm:$0xff]
    %v125 = vld [vmem:[%s4] sm:$0x1]
    %v127 = vlaneseq
    %v128 = vshrl.u32 %v127, 7
    %v129 = vsub.s32 0, %v128
    %v130 = vrot.slane %v125, %v129
    %132 = vmatprep.subr.mxu0 0.0
    %133 = vmatpush1.msra.mxu0 %v109
    %134 = vmatprep.subr.mxu0 0.0
    %135 = vmatpush1.msra.mxu0 %v110
    %136 = vmatprep.subr.mxu0 0.0
    %137 = vmatpush1.msra.mxu0 %v111
    %138 = vmatprep.subr.mxu0 0.0
    %139 = vmatpush1.msra.mxu0 %v112
    %140 = vmatprep.subr.mxu0 0.0
    %141 = vmatpush1.msra.mxu0 %v113
    %142 = vmatprep.subr.mxu0 0.0
    %143 = vmatpush1.msra.mxu0 %v114
    %144 = vmatprep.subr.mxu0 0.0
    %145 = vmatpush1.msra.mxu0 %v115
    %146 = vmatprep.subr.mxu0 0.0
    %147 = vmatpush1.msra.mxu0 %v116
    %148 = vmatprep.subr.mxu0 0.0
    %149 = vmatpush1.msra.mxu0 %v117
    %150 = vmatprep.subr.mxu0 0.0
    %151 = vmatpush1.msra.mxu0 %v118
    %152 = vmatprep.subr.mxu0 0.0
    %153 = vmatpush1.msra.mxu0 %v119
    %154 = vmatprep.subr.mxu0 0.0
    %155 = vmatpush1.msra.mxu0 %v120
    %156 = vmatprep.subr.mxu0 0.0
    %157 = vmatpush1.msra.mxu0 %v121
    %158 = vmatprep.subr.mxu0 0.0
    %159 = vmatpush1.msra.mxu0 %v122
    %160 = vmatprep.subr.mxu0 0.0
    %161 = vmatpush1.msra.mxu0 %v123
    %162 = vmatprep.subr.mxu0 0.0
    %163 = vmatpush1.msra.mxu0 %v124
    %164 = vmatprep.subr.mxu0 0.0
    %165 = vmatpush1.msra.mxu0 0.0
    %166 = vmatprep.subr.mxu0 0.0
    %167 = vmatpush1.msra.mxu0 0.0
    %168 = vmatprep.subr.mxu0 0.0
    %169 = vmatpush1.msra.mxu0 0.0
    %170 = vmatprep.subr.mxu0 0.0
    %171 = vmatpush1.msra.mxu0 0.0
    %172 = vmatprep.subr.mxu0 0.0
    %173 = vmatpush1.msra.mxu0 0.0
    %174 = vmatprep.subr.mxu0 0.0
    %175 = vmatpush1.msra.mxu0 0.0
    %176 = vmatprep.subr.mxu0 0.0
    %177 = vmatpush1.msra.mxu0 0.0
    %178 = vmatprep.subr.mxu0 0.0
    %179 = vmatpush1.msra.mxu0 0.0
    %180 = vmatprep.subr.mxu0 0.0
    %181 = vmatpush1.msra.mxu0 0.0
    %182 = vmatprep.subr.mxu0 0.0
    %183 = vmatpush1.msra.mxu0 0.0
    %184 = vmatprep.subr.mxu0 0.0
    %185 = vmatpush1.msra.mxu0 0.0
    %186 = vmatprep.subr.mxu0 0.0
    %187 = vmatpush1.msra.mxu0 0.0
    %188 = vmatprep.subr.mxu0 0.0
    %189 = vmatpush1.msra.mxu0 0.0
    %190 = vmatprep.subr.mxu0 0.0
    %191 = vmatpush1.msra.mxu0 0.0
    %192 = vmatprep.subr.mxu0 0.0
    %193 = vmatpush1.msra.mxu0 0.0
    %194 = vmatprep.subr.mxu0 0.0
    %195 = vmatpush1.msra.mxu0 0.0
    %196 = vmatprep.mubr.f32.mxu0 0.0
    %197 = vmatmul.mubr.f32.gmra.mrb[0].mxu0 %v108
    %v198 = vpop.f32.mrb[0].mxu0
    %v199 = vadd.f32 %v130, %v198
    %v200 = vpop.f32.mrb[0].mxu0
    %201 = vdwg.mxu0
    %v202 = vtanh.pop %v199
    %vm203 = vcmask 517120
    %204 = vst.msk [vmem:[#allocation2] sm:$0x3] %vm203, %v202
    // Predicated region
    $region22: #{tpu_custom_call.1} parent=1 // pred_check
      _
    $region23: #{tpu_custom_call.1} parent=1 // pred_check_branch
      %206 = sbr.rel (0) target = $region25
    $region24: #{tpu_custom_call.1} parent=1 // pred_region
      %s208 = ssub.s32 32, 32
      %209 = vsyncadd [#allocation3], %s208
      %s211 = sshll.u32 [#allocation2], 4
      %s212 = int_to_ptr.vmem [resolvable:$true] %s211
      %214 = dma.vmem_to_hbm [thread:$0]  %s212, 32, %s5, [#allocation3]
    $region25: #{tpu_custom_call.1} parent=1 // pred_fallthru
      _
    // Predicated region
    $region26: #{tpu_custom_call.1} parent=1 // pred_check
      _
    $region27: #{tpu_custom_call.1} parent=1 // pred_check_branch
      %216 = sbr.rel (0) target = $region29
    $region28: #{tpu_custom_call.1} parent=1 // pred_region
      %217 = dma.done [#allocation3], 32
    $region29: #{tpu_custom_call.1} parent=1 // pred_fallthru
      _
    %218 = vsyncpa [#allocation3], 1

</llo_original>
